<compile_context>
chip_gen: v7x
topology: tpu7x:2x2x1
jax: 0.10.0
libtpu: 0.0.40
codegen_flags: <defaults>
</compile_context>

<pallas_src>
import jax
import jax.numpy as jnp
from jax.experimental import pallas as pl
from jax.experimental.pallas import tpu as pltpu


# ---------------------------------------------------------------------------
# Padding helpers.
# ---------------------------------------------------------------------------
def _round_up(v, m):
    return (v + m - 1) // m * m


def _pad2(x, rows, cols):
    r, c = x.shape
    return jnp.pad(x, ((0, rows - r), (0, cols - c)))


# ---------------------------------------------------------------------------
# Fused forward kernel: 4 x (H@W -> A_norm@(.) + bias -> ReLU) + node-mean.
# Everything is VMEM-resident; single invocation (no grid).
# ---------------------------------------------------------------------------
def _make_fused_kernel(n_layers: int, n_real: int, n_pad: int):
    inv_n = 1.0 / float(n_real)

    def kernel(*refs):
        a_ref = refs[0]                               # bf16 [n_pad, n_pad]
        x_ref = refs[1]                               # bf16 [n_pad, f_in_pad]
        w_refs = refs[2:2 + n_layers]                 # bf16 [fi_pad, fo_pad]
        b_refs = refs[2 + n_layers:2 + 2 * n_layers]  # f32  [1, fo_pad]
        o_ref = refs[2 + 2 * n_layers]                # f32  [1, fo_last_pad]

        a = a_ref[...]
        h = x_ref[...]
        h_f32 = None
        for li in range(n_layers):
            w = w_refs[li][...]
            b = b_refs[li][...]
            # Feature transform on the MXU (bf16 operands, f32 accumulate).
            h_lin = jnp.dot(h, w, preferred_element_type=jnp.float32)
            # Neighborhood aggregation + fused bias + ReLU.
            agg = jnp.dot(a, h_lin.astype(jnp.bfloat16),
                          preferred_element_type=jnp.float32)
            h_f32 = jnp.maximum(agg + b, 0.0)
            # F.dropout(p=0) is the identity -> omitted.
            h = h_f32.astype(jnp.bfloat16)

        # Mean over the real nodes only; mask is emitted only if padding exists.
        out = h_f32
        if n_real != n_pad:
            rows = jax.lax.broadcasted_iota(jnp.int32, out.shape, 0)
            out = jnp.where(rows < n_real, out, 0.0)
        o_ref[...] = jnp.sum(out, axis=0, keepdims=True) * inv_n

    return kernel


# ---------------------------------------------------------------------------
# Full Node_only forward.
# ---------------------------------------------------------------------------
def node_only_forward(x, edge_index, params):
    """x: [N, F_in] f32, edge_index: [2, E] int32, params: list of (W [fi,fo], b [fo]) f32.

    Returns [1, F_out_last] f32 (mean over nodes of the 4-layer GCN stack)."""
    N, f_in = x.shape
    n_layers = len(params)

    # --- glue: dense normalized adjacency (scatter has no clean in-kernel equivalent).
    # PyG gcn_norm: edge weights scatter-ADD (duplicates count), then
    # add_remaining_self_loops(fill_value=1) -> self loops dedup to weight 1.
    src, dst = edge_index[0], edge_index[1]
    off_diag = (src != dst).astype(jnp.float32)
    adj = jnp.zeros((N, N), jnp.float32).at[dst, src].add(off_diag)
    diag = jnp.arange(N)
    adj = adj.at[diag, diag].set(1.0)
    deg = jnp.sum(adj, axis=1)
    dinv = jnp.where(deg > 0, jax.lax.rsqrt(deg), 0.0)
    a_norm = adj * dinv[:, None] * dinv[None, :]

    # --- pad to TPU-friendly sizes: nodes -> mult of 8 (sublane), features -> mult of 128 (lane).
    n_pad = _round_up(N, 8)
    a_p = _pad2(a_norm, n_pad, n_pad).astype(jnp.bfloat16)
    x_p = _pad2(x, n_pad, _round_up(f_in, 128)).astype(jnp.bfloat16)

    w_ps, b_ps = [], []
    for (w, b) in params:
        fi, fo = w.shape
        fi_pad, fo_pad = _round_up(fi, 128), _round_up(fo, 128)
        w_ps.append(_pad2(w, fi_pad, fo_pad).astype(jnp.bfloat16))
        b_ps.append(jnp.pad(b, (0, fo_pad - fo)).astype(jnp.float32).reshape(1, fo_pad))

    fo_last = params[-1][0].shape[1]
    fo_last_pad = _round_up(fo_last, 128)

    # Everything fits in VMEM with huge headroom (~1 MiB total on all generations),
    # so every operand is a whole-array VMEM-resident ref and the grid is empty.
    vmem = pl.BlockSpec(memory_space=pltpu.MemorySpace.VMEM)

    out = pl.pallas_call(
        _make_fused_kernel(n_layers, N, n_pad),
        out_shape=jax.ShapeDtypeStruct((1, fo_last_pad), jnp.float32),
        in_specs=[vmem] * (2 + 2 * n_layers),
        out_specs=vmem,
        compiler_params=pltpu.CompilerParams(vmem_limit_bytes=32 * 1024 * 1024),
    )(a_p, x_p, *w_ps, *b_ps)

    return out[:, :fo_last]


# ---------------------------------------------------------------------------
# Demo.
# ---------------------------------------------------------------------------
if __name__ == "__main__":
    key = jax.random.PRNGKey(0)
    keys = jax.random.split(key, 12)

    # Small synthetic graph; module dims from Node_only defaults.
    N, E = 16, 40
    INPUT_DIMENSION, HIDDEN_DIMENSION, OUTPUT_DIMENSION = 100, 256, 200
    dims = [INPUT_DIMENSION, HIDDEN_DIMENSION * 2, HIDDEN_DIMENSION,
            HIDDEN_DIMENSION // 2, OUTPUT_DIMENSION]   # 100 -> 512 -> 256 -> 128 -> 200

    x = jax.random.normal(keys[0], (N, INPUT_DIMENSION), dtype=jnp.float32)
    src = jax.random.randint(keys[1], (E,), 0, N, dtype=jnp.int32)
    dst = jax.random.randint(keys[2], (E,), 0, N, dtype=jnp.int32)
    edge_index = jnp.stack([src, dst], axis=0)          # [2, E]

    params = []
    for li in range(4):
        fi, fo = dims[li], dims[li + 1]
        w = (jax.random.normal(keys[3 + 2 * li], (fi, fo), dtype=jnp.float32)
             / jnp.sqrt(jnp.float32(fi)))
        b = 0.1 * jax.random.normal(keys[4 + 2 * li], (fo,), dtype=jnp.float32)
        params.append((w, b))

    out = node_only_forward(x, edge_index, params)
    jax.block_until_ready(out)
    assert out.shape == (1, OUTPUT_DIMENSION) and out.dtype == jnp.float32
    assert bool(jnp.all(jnp.isfinite(out)))
    print("KERNEL_OK")
</pallas_src>

<mosaic_0001>
module attributes {stable_mosaic.version = 11 : i64} {
  func.func @kernel(%arg0: memref<16x16xbf16, #tpu.memory_space<vmem>>, %arg1: memref<16x128xbf16, #tpu.memory_space<vmem>>, %arg2: memref<128x512xbf16, #tpu.memory_space<vmem>>, %arg3: memref<512x256xbf16, #tpu.memory_space<vmem>>, %arg4: memref<256x128xbf16, #tpu.memory_space<vmem>>, %arg5: memref<128x256xbf16, #tpu.memory_space<vmem>>, %arg6: memref<1x512xf32, #tpu.memory_space<vmem>>, %arg7: memref<1x256xf32, #tpu.memory_space<vmem>>, %arg8: memref<1x128xf32, #tpu.memory_space<vmem>>, %arg9: memref<1x256xf32, #tpu.memory_space<vmem>>, %arg10: memref<1x256xf32, #tpu.memory_space<vmem>>) attributes {dimension_semantics = [], scalar_prefetch = 0 : i64, scratch_operands = 0 : i64, tpu.core_type = #tpu.core_type<tc>} {
    %c0 = arith.constant 0 : index
    %c0_0 = arith.constant 0 : index
    %0 = vector.load %arg0[%c0, %c0_0] : memref<16x16xbf16, #tpu.memory_space<vmem>>, vector<16x16xbf16>
    %c0_1 = arith.constant 0 : index
    %c0_2 = arith.constant 0 : index
    %1 = vector.load %arg1[%c0_1, %c0_2] : memref<16x128xbf16, #tpu.memory_space<vmem>>, vector<16x128xbf16>
    %c0_3 = arith.constant 0 : index
    %c0_4 = arith.constant 0 : index
    %2 = vector.load %arg2[%c0_3, %c0_4] : memref<128x512xbf16, #tpu.memory_space<vmem>>, vector<128x512xbf16>
    %c0_5 = arith.constant 0 : index
    %c0_6 = arith.constant 0 : index
    %3 = vector.load %arg6[%c0_5, %c0_6] : memref<1x512xf32, #tpu.memory_space<vmem>>, vector<1x512xf32>
    %cst = arith.constant dense<0.000000e+00> : vector<16x512xf32>
    %4 = tpu.matmul %1, %2, %cst {dimension_numbers = #tpu.dot_dimension_numbers<[1], [0], [0], [1], [0, 0, 1, 1], [], []>} : vector<16x128xbf16>, vector<128x512xbf16>, vector<16x512xf32> -> vector<16x512xf32>
    %5 = arith.truncf %4 : vector<16x512xf32> to vector<16x512xbf16>
    %cst_7 = arith.constant dense<0.000000e+00> : vector<16x512xf32>
    %6 = tpu.matmul %0, %5, %cst_7 {dimension_numbers = #tpu.dot_dimension_numbers<[1], [0], [0], [1], [0, 0, 1, 1], [], []>} : vector<16x16xbf16>, vector<16x512xbf16>, vector<16x512xf32> -> vector<16x512xf32>
    %7 = vector.broadcast %3 : vector<1x512xf32> to vector<16x512xf32>
    %8 = arith.addf %6, %7 : vector<16x512xf32>
    %cst_8 = arith.constant 0.000000e+00 : f32
    %9 = vector.broadcast %cst_8 : f32 to vector<16x512xf32>
    %10 = arith.maximumf %8, %9 : vector<16x512xf32>
    %11 = arith.truncf %10 : vector<16x512xf32> to vector<16x512xbf16>
    %c0_9 = arith.constant 0 : index
    %c0_10 = arith.constant 0 : index
    %12 = vector.load %arg3[%c0_9, %c0_10] : memref<512x256xbf16, #tpu.memory_space<vmem>>, vector<512x256xbf16>
    %c0_11 = arith.constant 0 : index
    %c0_12 = arith.constant 0 : index
    %13 = vector.load %arg7[%c0_11, %c0_12] : memref<1x256xf32, #tpu.memory_space<vmem>>, vector<1x256xf32>
    %cst_13 = arith.constant dense<0.000000e+00> : vector<16x256xf32>
    %14 = tpu.matmul %11, %12, %cst_13 {dimension_numbers = #tpu.dot_dimension_numbers<[1], [0], [0], [1], [0, 0, 1, 1], [], []>} : vector<16x512xbf16>, vector<512x256xbf16>, vector<16x256xf32> -> vector<16x256xf32>
    %15 = arith.truncf %14 : vector<16x256xf32> to vector<16x256xbf16>
    %cst_14 = arith.constant dense<0.000000e+00> : vector<16x256xf32>
    %16 = tpu.matmul %0, %15, %cst_14 {dimension_numbers = #tpu.dot_dimension_numbers<[1], [0], [0], [1], [0, 0, 1, 1], [], []>} : vector<16x16xbf16>, vector<16x256xbf16>, vector<16x256xf32> -> vector<16x256xf32>
    %17 = vector.broadcast %13 : vector<1x256xf32> to vector<16x256xf32>
    %18 = arith.addf %16, %17 : vector<16x256xf32>
    %cst_15 = arith.constant 0.000000e+00 : f32
    %19 = vector.broadcast %cst_15 : f32 to vector<16x256xf32>
    %20 = arith.maximumf %18, %19 : vector<16x256xf32>
    %21 = arith.truncf %20 : vector<16x256xf32> to vector<16x256xbf16>
    %c0_16 = arith.constant 0 : index
    %c0_17 = arith.constant 0 : index
    %22 = vector.load %arg4[%c0_16, %c0_17] : memref<256x128xbf16, #tpu.memory_space<vmem>>, vector<256x128xbf16>
    %c0_18 = arith.constant 0 : index
    %c0_19 = arith.constant 0 : index
    %23 = vector.load %arg8[%c0_18, %c0_19] : memref<1x128xf32, #tpu.memory_space<vmem>>, vector<1x128xf32>
    %cst_20 = arith.constant dense<0.000000e+00> : vector<16x128xf32>
    %24 = tpu.matmul %21, %22, %cst_20 {dimension_numbers = #tpu.dot_dimension_numbers<[1], [0], [0], [1], [0, 0, 1, 1], [], []>} : vector<16x256xbf16>, vector<256x128xbf16>, vector<16x128xf32> -> vector<16x128xf32>
    %25 = arith.truncf %24 : vector<16x128xf32> to vector<16x128xbf16>
    %cst_21 = arith.constant dense<0.000000e+00> : vector<16x128xf32>
    %26 = tpu.matmul %0, %25, %cst_21 {dimension_numbers = #tpu.dot_dimension_numbers<[1], [0], [0], [1], [0, 0, 1, 1], [], []>} : vector<16x16xbf16>, vector<16x128xbf16>, vector<16x128xf32> -> vector<16x128xf32>
    %27 = vector.broadcast %23 : vector<1x128xf32> to vector<16x128xf32>
    %28 = arith.addf %26, %27 : vector<16x128xf32>
    %cst_22 = arith.constant 0.000000e+00 : f32
    %29 = vector.broadcast %cst_22 : f32 to vector<16x128xf32>
    %30 = arith.maximumf %28, %29 : vector<16x128xf32>
    %31 = arith.truncf %30 : vector<16x128xf32> to vector<16x128xbf16>
    %c0_23 = arith.constant 0 : index
    %c0_24 = arith.constant 0 : index
    %32 = vector.load %arg5[%c0_23, %c0_24] : memref<128x256xbf16, #tpu.memory_space<vmem>>, vector<128x256xbf16>
    %c0_25 = arith.constant 0 : index
    %c0_26 = arith.constant 0 : index
    %33 = vector.load %arg9[%c0_25, %c0_26] : memref<1x256xf32, #tpu.memory_space<vmem>>, vector<1x256xf32>
    %cst_27 = arith.constant dense<0.000000e+00> : vector<16x256xf32>
    %34 = tpu.matmul %31, %32, %cst_27 {dimension_numbers = #tpu.dot_dimension_numbers<[1], [0], [0], [1], [0, 0, 1, 1], [], []>} : vector<16x128xbf16>, vector<128x256xbf16>, vector<16x256xf32> -> vector<16x256xf32>
    %35 = arith.truncf %34 : vector<16x256xf32> to vector<16x256xbf16>
    %cst_28 = arith.constant dense<0.000000e+00> : vector<16x256xf32>
    %36 = tpu.matmul %0, %35, %cst_28 {dimension_numbers = #tpu.dot_dimension_numbers<[1], [0], [0], [1], [0, 0, 1, 1], [], []>} : vector<16x16xbf16>, vector<16x256xbf16>, vector<16x256xf32> -> vector<16x256xf32>
    %37 = vector.broadcast %33 : vector<1x256xf32> to vector<16x256xf32>
    %38 = arith.addf %36, %37 : vector<16x256xf32>
    %cst_29 = arith.constant 0.000000e+00 : f32
    %39 = vector.broadcast %cst_29 : f32 to vector<16x256xf32>
    %40 = arith.maximumf %38, %39 : vector<16x256xf32>
    %cst_30 = arith.constant dense<0.000000e+00> : vector<256xf32>
    %41 = vector.multi_reduction <add>, %40, %cst_30 [0] : vector<16x256xf32> to vector<256xf32>
    %42 = vector.shape_cast %41 : vector<256xf32> to vector<1x256xf32>
    %cst_31 = arith.constant 6.250000e-02 : f32
    %43 = vector.broadcast %cst_31 : f32 to vector<1x256xf32>
    %44 = arith.mulf %42, %43 : vector<1x256xf32>
    %c0_32 = arith.constant 0 : index
    %c0_33 = arith.constant 0 : index
    %45 = vector.load %arg10[%c0_32, %c0_33] : memref<1x256xf32, #tpu.memory_space<vmem>>, vector<1x256xf32>
    tpu.vector_store %arg10[%c0_32, %c0_33], %44 {strides = array<i32>} : memref<1x256xf32, #tpu.memory_space<vmem>>, vector<1x256xf32>,
    return
  }
}

</mosaic_0001>

<llo_original>
// kernel: tpu_custom_call.1
$region0: #{tpu_custom_call.1}
  #allocation0 [shape = 'u32[]', space=smem, size = 0x4, offset = 0x4, fixed_abs, tag = 'smem constant byte address 0x4 - core index']
  #allocation1 [shape = 'u32[144,128]{1,0:T(1,128)}', space=vmem, size = 0x12000, scoped, tag = 'internal scratch']
  %s0 = inlined_call_operand.hbm [shape: bf16[16,16], index: 0, kind: input, shape index: {}]
  %s1 = inlined_call_operand.hbm [shape: bf16[16,128], index: 1, kind: input, shape index: {}]
  %s2 = inlined_call_operand.hbm [shape: bf16[128,512], index: 2, kind: input, shape index: {}]
  %s3 = inlined_call_operand.hbm [shape: bf16[512,256], index: 3, kind: input, shape index: {}]
  %s4 = inlined_call_operand.hbm [shape: bf16[256,128], index: 4, kind: input, shape index: {}]
  %s5 = inlined_call_operand.hbm [shape: bf16[128,256], index: 5, kind: input, shape index: {}]
  %s6 = inlined_call_operand.vmem [shape: f32[1,512], index: 6, kind: input, shape index: {}]
  %s7 = inlined_call_operand.vmem [shape: f32[1,256], index: 7, kind: input, shape index: {}]
  %s8 = inlined_call_operand.vmem [shape: f32[1,128], index: 8, kind: input, shape index: {}]
  %s9 = inlined_call_operand.vmem [shape: f32[1,256], index: 9, kind: input, shape index: {}]
  %s10 = inlined_call_operand.hbm [shape: f32[1,256], index: 10, kind: output, shape index: {}]
  %s11 = sld [smem:[#allocation0]]
  $region74: #{tpu_custom_call.1} parent=0
    _
  %s13 = ssub.s32 1, %s11
  %s14 = scalar_select 0, %s13, %s11
  $region1: #{tpu_custom_call.1} parent=0
    #allocation2 [shape = 'u8[4096]{0}', space=vmem, size = 0x1000, scoped, tag = 'input window, operand 0, single buffered']
    #allocation3 [shape = 's32[1]{0}', space=sflag, size = 0x4, scoped, tag = 'scoped memory for tpu_custom_call.1']
    #allocation4 [shape = 's32[1]{0}', space=sflag, size = 0x4, scoped, tag = 'scoped memory for tpu_custom_call.1']
    #allocation5 [shape = 'u8[4096]{0}', space=vmem, size = 0x1000, scoped, tag = 'input window, operand 1, single buffered']
    #allocation6 [shape = 's32[1]{0}', space=sflag, size = 0x4, scoped, tag = 'scoped memory for tpu_custom_call.1']
    #allocation7 [shape = 'u8[131072]{0}', space=vmem, size = 0x20000, scoped, tag = 'input window, operand 2, single buffered']
    #allocation8 [shape = 'u8[262144]{0}', space=vmem, size = 0x40000, scoped, tag = 'input window, operand 3, single buffered']
    #allocation9 [shape = 's32[1]{0}', space=sflag, size = 0x4, scoped, tag = 'scoped memory for tpu_custom_call.1']
    #allocation10 [shape = 'u8[65536]{0}', space=vmem, size = 0x10000, scoped, tag = 'input window, operand 4, single buffered']
    #allocation11 [shape = 'u8[65536]{0}', space=vmem, size = 0x10000, scoped, tag = 'input window, operand 5, single buffered']
    #allocation12 [shape = 's32[1]{0}', space=sflag, size = 0x4, scoped, tag = 'scoped memory for tpu_custom_call.1']
    #allocation13 [shape = 'u8[1024]{0}', space=vmem, size = 0x400, scoped, tag = 'output window, operand 0, single buffered']
    %15 = vsyncpa [#allocation3], 0
    %16 = vsyncpa [#allocation6], 0
    %17 = vsyncpa [#allocation9], 0
    %18 = vsyncpa [#allocation12], 0
    %19 = vsyncpa [#allocation4], 0
    // Predicated region
    $region2: #{tpu_custom_call.1} parent=1 // pred_check
      _
    $region3: #{tpu_custom_call.1} parent=1 // pred_check_branch
      %21 = sbr.rel (0) target = $region5
    $region4: #{tpu_custom_call.1} parent=1 // pred_region
      %s23 = ssub.s32 128, 128
      %24 = vsyncadd [#allocation3], %s23
      %s25 = sshll.u32 [#allocation2], 4
      %s26 = int_to_ptr.vmem [resolvable:$true] %s25
      %31 = dma.hbm_to_vmem [thread:$0]  %s0, 128, %s26, [#allocation3], 64, 64, 4
    $region5: #{tpu_custom_call.1} parent=1 // pred_fallthru
      _
    // Predicated region
    $region6: #{tpu_custom_call.1} parent=1 // pred_check
      _
    $region7: #{tpu_custom_call.1} parent=1 // pred_check_branch
      %33 = sbr.rel (0) target = $region9
    $region8: #{tpu_custom_call.1} parent=1 // pred_region
      %s35 = ssub.s32 128, 128
      %36 = vsyncadd [#allocation6], %s35
      %s37 = sshll.u32 [#allocation5], 4
      %s38 = int_to_ptr.vmem [resolvable:$true] %s37
      %43 = dma.hbm_to_vmem [thread:$0]  %s1, 128, %s38, [#allocation6], 64, 64, 4
    $region9: #{tpu_custom_call.1} parent=1 // pred_fallthru
      _
    // Predicated region
    $region10: #{tpu_custom_call.1} parent=1 // pred_check
      _
    $region11: #{tpu_custom_call.1} parent=1 // pred_check_branch
      %45 = sbr.rel (0) target = $region13
    $region12: #{tpu_custom_call.1} parent=1 // pred_region
      %s47 = ssub.s32 4096, 4096
      %48 = vsyncadd [#allocation6], %s47
      %s49 = sshll.u32 [#allocation7], 4
      %s50 = int_to_ptr.vmem [resolvable:$true] %s49
      %55 = dma.hbm_to_vmem [thread:$0]  %s2, 4096, %s50, [#allocation6], 256, 256, 16
    $region13: #{tpu_custom_call.1} parent=1 // pred_fallthru
      _
    // Predicated region
    $region14: #{tpu_custom_call.1} parent=1 // pred_check
      _
    $region15: #{tpu_custom_call.1} parent=1 // pred_check_branch
      %57 = sbr.rel (0) target = $region17
    $region16: #{tpu_custom_call.1} parent=1 // pred_region
      %s59 = ssub.s32 8192, 8192
      %60 = vsyncadd [#allocation9], %s59
      %s61 = sshll.u32 [#allocation8], 4
      %s62 = int_to_ptr.vmem [resolvable:$true] %s61
      %67 = dma.hbm_to_vmem [thread:$0]  %s3, 8192, %s62, [#allocation9], 128, 128, 8
    $region17: #{tpu_custom_call.1} parent=1 // pred_fallthru
      _
    // Predicated region
    $region18: #{tpu_custom_call.1} parent=1 // pred_check
      _
    $region19: #{tpu_custom_call.1} parent=1 // pred_check_branch
      %69 = sbr.rel (0) target = $region21
    $region20: #{tpu_custom_call.1} parent=1 // pred_region
      %s71 = ssub.s32 2048, 2048
      %72 = vsyncadd [#allocation9], %s71
      %s73 = sshll.u32 [#allocation10], 4
      %s74 = int_to_ptr.vmem [resolvable:$true] %s73
      %79 = dma.hbm_to_vmem [thread:$0]  %s4, 2048, %s74, [#allocation9], 64, 64, 4
    $region21: #{tpu_custom_call.1} parent=1 // pred_fallthru
      _
    // Predicated region
    $region22: #{tpu_custom_call.1} parent=1 // pred_check
      _
    $region23: #{tpu_custom_call.1} parent=1 // pred_check_branch
      %81 = sbr.rel (0) target = $region25
    $region24: #{tpu_custom_call.1} parent=1 // pred_region
      %s83 = ssub.s32 2048, 2048
      %84 = vsyncadd [#allocation12], %s83
      %s85 = sshll.u32 [#allocation11], 4
      %s86 = int_to_ptr.vmem [resolvable:$true] %s85
      %91 = dma.hbm_to_vmem [thread:$0]  %s5, 2048, %s86, [#allocation12], 128, 128, 8
    $region25: #{tpu_custom_call.1} parent=1 // pred_fallthru
      _
    // Predicated region
    $region26: #{tpu_custom_call.1} parent=1 // pred_check
      _
    $region27: #{tpu_custom_call.1} parent=1 // pred_check_branch
      %93 = sbr.rel (0) target = $region29
    $region28: #{tpu_custom_call.1} parent=1 // pred_region
      _
    $region29: #{tpu_custom_call.1} parent=1 // pred_fallthru
      _
    // Predicated region
    $region30: #{tpu_custom_call.1} parent=1 // pred_check
      _
    $region31: #{tpu_custom_call.1} parent=1 // pred_check_branch
      %95 = sbr.rel (0) target = $region33
    $region32: #{tpu_custom_call.1} parent=1 // pred_region
      _
    $region33: #{tpu_custom_call.1} parent=1 // pred_fallthru
      _
    // Predicated region
    $region34: #{tpu_custom_call.1} parent=1 // pred_check
      _
    $region35: #{tpu_custom_call.1} parent=1 // pred_check_branch
      %97 = sbr.rel (0) target = $region37
    $region36: #{tpu_custom_call.1} parent=1 // pred_region
      _
    $region37: #{tpu_custom_call.1} parent=1 // pred_fallthru
      _
    // Predicated region
    $region38: #{tpu_custom_call.1} parent=1 // pred_check
      _
    $region39: #{tpu_custom_call.1} parent=1 // pred_check_branch
      %99 = sbr.rel (0) target = $region41
    $region40: #{tpu_custom_call.1} parent=1 // pred_region
      _
    $region41: #{tpu_custom_call.1} parent=1 // pred_fallthru
      _
    // Predicated region
    $region42: #{tpu_custom_call.1} parent=1 // pred_check
      _
    $region43: #{tpu_custom_call.1} parent=1 // pred_check_branch
      %101 = sbr.rel (0) target = $region45
    $region44: #{tpu_custom_call.1} parent=1 // pred_region
      %102 = dma.done [#allocation3], 128
    $region45: #{tpu_custom_call.1} parent=1 // pred_fallthru
      _
    // Predicated region
    $region46: #{tpu_custom_call.1} parent=1 // pred_check
      _
    $region47: #{tpu_custom_call.1} parent=1 // pred_check_branch
      %104 = sbr.rel (0) target = $region49
    $region48: #{tpu_custom_call.1} parent=1 // pred_region
      %105 = dma.done [#allocation6], 128
    $region49: #{tpu_custom_call.1} parent=1 // pred_fallthru
      _
    // Predicated region
    $region50: #{tpu_custom_call.1} parent=1 // pred_check
      _
    $region51: #{tpu_custom_call.1} parent=1 // pred_check_branch
      %107 = sbr.rel (0) target = $region53
    $region52: #{tpu_custom_call.1} parent=1 // pred_region
      %108 = dma.done [#allocation6], 4096
    $region53: #{tpu_custom_call.1} parent=1 // pred_fallthru
      _
    // Predicated region
    $region54: #{tpu_custom_call.1} parent=1 // pred_check
      _
    $region55: #{tpu_custom_call.1} parent=1 // pred_check_branch
      %110 = sbr.rel (0) target = $region57
    $region56: #{tpu_custom_call.1} parent=1 // pred_region
      %111 = dma.done [#allocation9], 8192
    $region57: #{tpu_custom_call.1} parent=1 // pred_fallthru
      _
    // Predicated region
    $region58: #{tpu_custom_call.1} parent=1 // pred_check
      _
    $region59: #{tpu_custom_call.1} parent=1 // pred_check_branch
      %113 = sbr.rel (0) target = $region61
    $region60: #{tpu_custom_call.1} parent=1 // pred_region
      %114 = dma.done [#allocation9], 2048
    $region61: #{tpu_custom_call.1} parent=1 // pred_fallthru
      _
    // Predicated region
    $region62: #{tpu_custom_call.1} parent=1 // pred_check
      _
    $region63: #{tpu_custom_call.1} parent=1 // pred_check_branch
      %116 = sbr.rel (0) target = $region65
    $region64: #{tpu_custom_call.1} parent=1 // pred_region
      %117 = dma.done [#allocation12], 2048
    $region65: #{tpu_custom_call.1} parent=1 // pred_fallthru
      _
    %v119 = vld [vmem:[#allocation2] sm:$0xf]
    %v120 = vld [vmem:[#allocation2 + $0x4] sm:$0xf]
    %v121 = vld [vmem:[#allocation5] sm:$0xf]
    %v122 = vld [vmem:[#allocation5 + $0x4] sm:$0xf]
    %v123 = vld [vmem:[#allocation7] sm:$0xff]
    %v124 = vld [vmem:[#allocation7 + $0x8] sm:$0xff]
    %v125 = vld [vmem:[#allocation7 + $0x10] sm:$0xff]
    %v126 = vld [vmem:[#allocation7 + $0x18] sm:$0xff]
    %v127 = vld [vmem:[#allocation7 + $0x20] sm:$0xff]
    %v128 = vld [vmem:[#allocation7 + $0x28] sm:$0xff]
    %v129 = vld [vmem:[#allocation7 + $0x30] sm:$0xff]
    %v130 = vld [vmem:[#allocation7 + $0x38] sm:$0xff]
    %v131 = vld [vmem:[#allocation7 + $0x40] sm:$0xff]
    %v132 = vld [vmem:[#allocation7 + $0x48] sm:$0xff]
    %v133 = vld [vmem:[#allocation7 + $0x50] sm:$0xff]
    %v134 = vld [vmem:[#allocation7 + $0x58] sm:$0xff]
    %v135 = vld [vmem:[#allocation7 + $0x60] sm:$0xff]
    %v136 = vld [vmem:[#allocation7 + $0x68] sm:$0xff]
    %v137 = vld [vmem:[#allocation7 + $0x70] sm:$0xff]
    %v138 = vld [vmem:[#allocation7 + $0x78] sm:$0xff]
    %v139 = vld [vmem:[#allocation7 + $0x80] sm:$0xff]
    %v140 = vld [vmem:[#allocation7 + $0x88] sm:$0xff]
    %v141 = vld [vmem:[#allocation7 + $0x90] sm:$0xff]
    %v142 = vld [vmem:[#allocation7 + $0x98] sm:$0xff]
    %v143 = vld [vmem:[#allocation7 + $0xa0] sm:$0xff]
    %v144 = vld [vmem:[#allocation7 + $0xa8] sm:$0xff]
    %v145 = vld [vmem:[#allocation7 + $0xb0] sm:$0xff]
    %v146 = vld [vmem:[#allocation7 + $0xb8] sm:$0xff]
    %v147 = vld [vmem:[#allocation7 + $0xc0] sm:$0xff]
    %v148 = vld [vmem:[#allocation7 + $0xc8] sm:$0xff]
    %v149 = vld [vmem:[#allocation7 + $0xd0] sm:$0xff]
    %v150 = vld [vmem:[#allocation7 + $0xd8] sm:$0xff]
    %v151 = vld [vmem:[#allocation7 + $0xe0] sm:$0xff]
    %v152 = vld [vmem:[#allocation7 + $0xe8] sm:$0xff]
    %v153 = vld [vmem:[#allocation7 + $0xf0] sm:$0xff]
    %v154 = vld [vmem:[#allocation7 + $0xf8] sm:$0xff]
    %v155 = vld [vmem:[%s6] sm:$0xf]
    %v158 = vunpack.c.l.b16 %v121
    %v159 = vunpack.c.l.b16 %v122
    %v160 = vpack.c.b16 %v159, %v158
    %v194 = vunpack.c.l.b16 %v123
    %v195 = vunpack.c.h.b16 %v123
    %v196 = vunpack.c.l.b16 %v124
    %v197 = vunpack.c.h.b16 %v124
    %v198 = vunpack.c.l.b16 %v125
    %v199 = vunpack.c.h.b16 %v125
    %v200 = vunpack.c.l.b16 %v126
    %v201 = vunpack.c.h.b16 %v126
    %v202 = vunpack.c.l.b16 %v127
    %v203 = vunpack.c.h.b16 %v127
    %v204 = vunpack.c.l.b16 %v128
    %v205 = vunpack.c.h.b16 %v128
    %v206 = vunpack.c.l.b16 %v129
    %v207 = vunpack.c.h.b16 %v129
    %v208 = vunpack.c.l.b16 %v130
    %v209 = vunpack.c.h.b16 %v130
    %v210 = vunpack.c.l.b16 %v131
    %v211 = vunpack.c.h.b16 %v131
    %v212 = vunpack.c.l.b16 %v132
    %v213 = vunpack.c.h.b16 %v132
    %v214 = vunpack.c.l.b16 %v133
    %v215 = vunpack.c.h.b16 %v133
    %v216 = vunpack.c.l.b16 %v134
    %v217 = vunpack.c.h.b16 %v134
    %v218 = vunpack.c.l.b16 %v135
    %v219 = vunpack.c.h.b16 %v135
    %v220 = vunpack.c.l.b16 %v136
    %v221 = vunpack.c.h.b16 %v136
    %v222 = vunpack.c.l.b16 %v137
    %v223 = vunpack.c.h.b16 %v137
    %v224 = vunpack.c.l.b16 %v138
    %v225 = vunpack.c.h.b16 %v138
    %v226 = vunpack.c.l.b16 %v139
    %v227 = vunpack.c.h.b16 %v139
    %v228 = vunpack.c.l.b16 %v140
    %v229 = vunpack.c.h.b16 %v140
    %v230 = vunpack.c.l.b16 %v141
    %v231 = vunpack.c.h.b16 %v141
    %v232 = vunpack.c.l.b16 %v142
    %v233 = vunpack.c.h.b16 %v142
    %v234 = vunpack.c.l.b16 %v143
    %v235 = vunpack.c.h.b16 %v143
    %v236 = vunpack.c.l.b16 %v144
    %v237 = vunpack.c.h.b16 %v144
    %v238 = vunpack.c.l.b16 %v145
    %v239 = vunpack.c.h.b16 %v145
    %v240 = vunpack.c.l.b16 %v146
    %v241 = vunpack.c.h.b16 %v146
    %v242 = vunpack.c.l.b16 %v147
    %v243 = vunpack.c.h.b16 %v147
    %v244 = vunpack.c.l.b16 %v148
    %v245 = vunpack.c.h.b16 %v148
    %v246 = vunpack.c.l.b16 %v149
    %v247 = vunpack.c.h.b16 %v149
    %v248 = vunpack.c.l.b16 %v150
    %v249 = vunpack.c.h.b16 %v150
    %v250 = vunpack.c.l.b16 %v151
    %v251 = vunpack.c.h.b16 %v151
    %v252 = vunpack.c.l.b16 %v152
    %v253 = vunpack.c.h.b16 %v152
    %v254 = vunpack.c.l.b16 %v153
    %v255 = vunpack.c.h.b16 %v153
    %v256 = vunpack.c.l.b16 %v154
    %v257 = vunpack.c.h.b16 %v154
    %v258 = vpack.c.b16 %v198, %v194
    %v259 = vpack.c.b16 %v199, %v195
    %v260 = vpack.c.b16 %v200, %v196
    %v261 = vpack.c.b16 %v201, %v197
    %v262 = vpack.c.b16 %v206, %v202
    %v263 = vpack.c.b16 %v207, %v203
    %v264 = vpack.c.b16 %v208, %v204
    %v265 = vpack.c.b16 %v209, %v205
    %v266 = vpack.c.b16 %v214, %v210
    %v267 = vpack.c.b16 %v215, %v211
    %v268 = vpack.c.b16 %v216, %v212
    %v269 = vpack.c.b16 %v217, %v213
    %v270 = vpack.c.b16 %v222, %v218
    %v271 = vpack.c.b16 %v223, %v219
    %v272 = vpack.c.b16 %v224, %v220
    %v273 = vpack.c.b16 %v225, %v221
    %v274 = vpack.c.b16 %v230, %v226
    %v275 = vpack.c.b16 %v231, %v227
    %v276 = vpack.c.b16 %v232, %v228
    %v277 = vpack.c.b16 %v233, %v229
    %v278 = vpack.c.b16 %v238, %v234
    %v279 = vpack.c.b16 %v239, %v235
    %v280 = vpack.c.b16 %v240, %v236
    %v281 = vpack.c.b16 %v241, %v237
    %v282 = vpack.c.b16 %v246, %v242
    %v283 = vpack.c.b16 %v247, %v243
    %v284 = vpack.c.b16 %v248, %v244
    %v285 = vpack.c.b16 %v249, %v245
    %v286 = vpack.c.b16 %v254, %v250
    %v287 = vpack.c.b16 %v255, %v251
    %v288 = vpack.c.b16 %v256, %v252
    %v289 = vpack.c.b16 %v257, %v253
    %322 = vmatprep.subr.bf16.mxu0 %v259
    %323 = vmatpush1.bf16.msra.mxu0 %v258
    %324 = vmatprep.subr.bf16.mxu0 %v263
    %325 = vmatpush1.bf16.msra.mxu0 %v262
    %326 = vmatprep.subr.bf16.mxu0 %v267
    %327 = vmatpush1.bf16.msra.mxu0 %v266
    %328 = vmatprep.subr.bf16.mxu0 %v271
    %329 = vmatpush1.bf16.msra.mxu0 %v270
    %330 = vmatprep.subr.bf16.mxu0 %v275
    %331 = vmatpush1.bf16.msra.mxu0 %v274
    %332 = vmatprep.subr.bf16.mxu0 %v279
    %333 = vmatpush1.bf16.msra.mxu0 %v278
    %334 = vmatprep.subr.bf16.mxu0 %v283
    %335 = vmatpush1.bf16.msra.mxu0 %v282
    %336 = vmatprep.subr.bf16.mxu0 %v287
    %337 = vmatpush1.bf16.msra.mxu0 %v286
    %338 = vmatprep.subr.bf16.mxu0 0
    %339 = vmatpush1.bf16.msra.mxu0 0
    %340 = vmatprep.subr.bf16.mxu0 0
    %341 = vmatpush1.bf16.msra.mxu0 0
    %342 = vmatprep.subr.bf16.mxu0 0
    %343 = vmatpush1.bf16.msra.mxu0 0
    %344 = vmatprep.subr.bf16.mxu0 0
    %345 = vmatpush1.bf16.msra.mxu0 0
    %346 = vmatprep.subr.bf16.mxu0 0
    %347 = vmatpush1.bf16.msra.mxu0 0
    %348 = vmatprep.subr.bf16.mxu0 0
    %349 = vmatpush1.bf16.msra.mxu0 0
    %350 = vmatprep.subr.bf16.mxu0 0
    %351 = vmatpush1.bf16.msra.mxu0 0
    %352 = vmatprep.subr.bf16.mxu0 0
    %353 = vmatpush1.bf16.msra.mxu0 0
    %354 = vmatprep.mubr.bf16.mxu0 0
    %355 = vmatmul.mubr.bf16.gmra.mrb[0].mxu0 %v160
    %v356 = vpop.f32.mrb[0].mxu0
    %v357 = vadd.f32 0.0, %v356
    %v358 = vpop.f32.mrb[0].mxu0
    %v359 = vadd.f32 0.0, %v358
    %v360 = vpop.f32.mrb[0].mxu0
    %v361 = vadd.f32 0.0, %v360
    %v362 = vpop.f32.mrb[0].mxu0
    %v363 = vadd.f32 0.0, %v362
    %364 = vdwg.mxu0
    %365 = vmatprep.subr.bf16.mxu0 %v261
    %366 = vmatpush1.bf16.msra.mxu0 %v260
    %367 = vmatprep.subr.bf16.mxu0 %v265
    %368 = vmatpush1.bf16.msra.mxu0 %v264
    %369 = vmatprep.subr.bf16.mxu0 %v269
    %370 = vmatpush1.bf16.msra.mxu0 %v268
    %371 = vmatprep.subr.bf16.mxu0 %v273
    %372 = vmatpush1.bf16.msra.mxu0 %v272
    %373 = vmatprep.subr.bf16.mxu0 %v277
    %374 = vmatpush1.bf16.msra.mxu0 %v276
    %375 = vmatprep.subr.bf16.mxu0 %v281
    %376 = vmatpush1.bf16.msra.mxu0 %v280
    %377 = vmatprep.subr.bf16.mxu0 %v285
    %378 = vmatpush1.bf16.msra.mxu0 %v284
    %379 = vmatprep.subr.bf16.mxu0 %v289
    %380 = vmatpush1.bf16.msra.mxu0 %v288
    %381 = vmatprep.subr.bf16.mxu0 0
    %382 = vmatpush1.bf16.msra.mxu0 0
    %383 = vmatprep.subr.bf16.mxu0 0
    %384 = vmatpush1.bf16.msra.mxu0 0
    %385 = vmatprep.subr.bf16.mxu0 0
    %386 = vmatpush1.bf16.msra.mxu0 0
    %387 = vmatprep.subr.bf16.mxu0 0
    %388 = vmatpush1.bf16.msra.mxu0 0
    %389 = vmatprep.subr.bf16.mxu0 0
    %390 = vmatpush1.bf16.msra.mxu0 0
    %391 = vmatprep.subr.bf16.mxu0 0
    %392 = vmatpush1.bf16.msra.mxu0 0
    %393 = vmatprep.subr.bf16.mxu0 0
    %394 = vmatpush1.bf16.msra.mxu0 0
    %395 = vmatprep.subr.bf16.mxu0 0
    %396 = vmatpush1.bf16.msra.mxu0 0
    %397 = vmatprep.mubr.bf16.mxu0 0
    %398 = vmatmul.mubr.bf16.gmra.mrb[0].mxu0 %v160
    %v399 = vpop.f32.mrb[0].mxu0
    %v400 = vadd.f32 0.0, %v399
    %v401 = vpop.f32.mrb[0].mxu0
    %v402 = vadd.f32 0.0, %v401
    %v403 = vpop.f32.mrb[0].mxu0
    %v404 = vadd.f32 0.0, %v403
    %v405 = vpop.f32.mrb[0].mxu0
    %v406 = vadd.f32 0.0, %v405
    %407 = vdwg.mxu0
    %v408 = vpack.c.bf16 %v361, %v357
    %v409 = vpack.c.bf16 %v363, %v359
    %v410 = vpack.c.bf16 %v404, %v400
    %v411 = vpack.c.bf16 %v406, %v402
    %v413 = vlaneseq
    %v414 = vshrl.u32 %v413, 7
    %v415 = vsub.s32 0, %v414
    %v416 = vrot.slane %v155, %v415
    %v417 = vlaneseq
    %v418 = vshrl.u32 %v417, 7
    %v419 = vsub.s32 1, %v418
    %v420 = vrot.slane %v155, %v419
    %v421 = vlaneseq
    %v422 = vshrl.u32 %v421, 7
    %v423 = vsub.s32 2, %v422
    %v424 = vrot.slane %v155, %v423
    %v425 = vlaneseq
    %v426 = vshrl.u32 %v425, 7
    %v427 = vsub.s32 3, %v426
    %v428 = vrot.slane %v155, %v427
    %v435 = vunpack.c.l.b16 %v119
    %v436 = vunpack.c.l.b16 %v120
    %v437 = vpack.c.b16 %v436, %v435
    %vm438 = vcmask 130048
    %v440 = vsel %vm438, %v437, 0
    %442 = vmatprep.subr.bf16.mxu0 %v409
    %443 = vmatpush1.bf16.msra.mxu0 %v408
    %444 = vmatprep.subr.bf16.mxu0 0
    %445 = vmatpush1.bf16.msra.mxu0 0
    %446 = vmatprep.subr.bf16.mxu0 0
    %447 = vmatpush1.bf16.msra.mxu0 0
    %448 = vmatprep.subr.bf16.mxu0 0
    %449 = vmatpush1.bf16.msra.mxu0 0
    %450 = vmatprep.subr.bf16.mxu0 0
    %451 = vmatpush1.bf16.msra.mxu0 0
    %452 = vmatprep.subr.bf16.mxu0 0
    %453 = vmatpush1.bf16.msra.mxu0 0
    %454 = vmatprep.subr.bf16.mxu0 0
    %455 = vmatpush1.bf16.msra.mxu0 0
    %456 = vmatprep.subr.bf16.mxu0 0
    %457 = vmatpush1.bf16.msra.mxu0 0
    %458 = vmatprep.subr.bf16.mxu0 0
    %459 = vmatpush1.bf16.msra.mxu0 0
    %460 = vmatprep.subr.bf16.mxu0 0
    %461 = vmatpush1.bf16.msra.mxu0 0
    %462 = vmatprep.subr.bf16.mxu0 0
    %463 = vmatpush1.bf16.msra.mxu0 0
    %464 = vmatprep.subr.bf16.mxu0 0
    %465 = vmatpush1.bf16.msra.mxu0 0
    %466 = vmatprep.subr.bf16.mxu0 0
    %467 = vmatpush1.bf16.msra.mxu0 0
    %468 = vmatprep.subr.bf16.mxu0 0
    %469 = vmatpush1.bf16.msra.mxu0 0
    %470 = vmatprep.subr.bf16.mxu0 0
    %471 = vmatpush1.bf16.msra.mxu0 0
    %472 = vmatprep.subr.bf16.mxu0 0
    %473 = vmatpush1.bf16.msra.mxu0 0
    %474 = vmatprep.mubr.bf16.mxu0 0
    %475 = vmatmul.mubr.bf16.gmra.mrb[0].mxu0 %v440
    %v476 = vpop.f32.mrb[0].mxu0
    %v477 = vadd.f32 %v416, %v476
    %v478 = vpop.f32.mrb[0].mxu0
    %v479 = vadd.f32 %v420, %v478
    %v480 = vpop.f32.mrb[0].mxu0
    %v481 = vadd.f32 %v416, %v480
    %v482 = vpop.f32.mrb[0].mxu0
    %v483 = vadd.f32 %v420, %v482
    %484 = vdwg.mxu0
    %485 = vmatprep.subr.bf16.mxu0 %v411
    %486 = vmatpush1.bf16.msra.mxu0 %v410
    %487 = vmatprep.subr.bf16.mxu0 0
    %488 = vmatpush1.bf16.msra.mxu0 0
    %489 = vmatprep.subr.bf16.mxu0 0
    %490 = vmatpush1.bf16.msra.mxu0 0
    %491 = vmatprep.subr.bf16.mxu0 0
    %492 = vmatpush1.bf16.msra.mxu0 0
    %493 = vmatprep.subr.bf16.mxu0 0
    %494 = vmatpush1.bf16.msra.mxu0 0
    %495 = vmatprep.subr.bf16.mxu0 0
    %496 = vmatpush1.bf16.msra.mxu0 0
    %497 = vmatprep.subr.bf16.mxu0 0
    %498 = vmatpush1.bf16.msra.mxu0 0
    %499 = vmatprep.subr.bf16.mxu0 0
    %500 = vmatpush1.bf16.msra.mxu0 0
    %501 = vmatprep.subr.bf16.mxu0 0
    %502 = vmatpush1.bf16.msra.mxu0 0
    %503 = vmatprep.subr.bf16.mxu0 0
    %504 = vmatpush1.bf16.msra.mxu0 0
    %505 = vmatprep.subr.bf16.mxu0 0
    %506 = vmatpush1.bf16.msra.mxu0 0
    %507 = vmatprep.subr.bf16.mxu0 0
    %508 = vmatpush1.bf16.msra.mxu0 0
    %509 = vmatprep.subr.bf16.mxu0 0
    %510 = vmatpush1.bf16.msra.mxu0 0
    %511 = vmatprep.subr.bf16.mxu0 0
    %512 = vmatpush1.bf16.msra.mxu0 0
    %513 = vmatprep.subr.bf16.mxu0 0
    %514 = vmatpush1.bf16.msra.mxu0 0
    %515 = vmatprep.subr.bf16.mxu0 0
    %516 = vmatpush1.bf16.msra.mxu0 0
    %517 = vmatprep.mubr.bf16.mxu0 0
    %518 = vmatmul.mubr.bf16.gmra.mrb[0].mxu0 %v440
    %v519 = vpop.f32.mrb[0].mxu0
    %v520 = vadd.f32 %v424, %v519
    %v521 = vpop.f32.mrb[0].mxu0
    %v522 = vadd.f32 %v428, %v521
    %v523 = vpop.f32.mrb[0].mxu0
    %v524 = vadd.f32 %v424, %v523
    %v525 = vpop.f32.mrb[0].mxu0
    %v526 = vadd.f32 %v428, %v525
    %527 = vdwg.mxu0
    %v528 = vmax.f32 %v477, 0.0
    %v529 = vmax.f32 %v479, 0.0
    %v530 = vmax.f32 %v520, 0.0
    %v531 = vmax.f32 %v522, 0.0
    %v532 = vmax.f32 %v481, 0.0
    %v533 = vmax.f32 %v483, 0.0
    %v534 = vmax.f32 %v524, 0.0
    %v535 = vmax.f32 %v526, 0.0
    %v536 = vpack.c.bf16 %v532, %v528
    %v537 = vpack.c.bf16 %v533, %v529
    %v538 = vpack.c.bf16 %v534, %v530
    %v539 = vpack.c.bf16 %v535, %v531
    %v540 = vld [vmem:[#allocation8] sm:$0xff]
    %v541 = vld [vmem:[#allocation8 + $0x8] sm:$0xff]
    %v542 = vld [vmem:[#allocation8 + $0x10] sm:$0xff]
    %v543 = vld [vmem:[#allocation8 + $0x18] sm:$0xff]
    %v544 = vld [vmem:[#allocation8 + $0x20] sm:$0xff]
    %v545 = vld [vmem:[#allocation8 + $0x28] sm:$0xff]
    %v546 = vld [vmem:[#allocation8 + $0x30] sm:$0xff]
    %v547 = vld [vmem:[#allocation8 + $0x38] sm:$0xff]
    %v548 = vld [vmem:[#allocation8 + $0x40] sm:$0xff]
    %v549 = vld [vmem:[#allocation8 + $0x48] sm:$0xff]
    %v550 = vld [vmem:[#allocation8 + $0x50] sm:$0xff]
    %v551 = vld [vmem:[#allocation8 + $0x58] sm:$0xff]
    %v552 = vld [vmem:[#allocation8 + $0x60] sm:$0xff]
    %v553 = vld [vmem:[#allocation8 + $0x68] sm:$0xff]
    %v554 = vld [vmem:[#allocation8 + $0x70] sm:$0xff]
    %v555 = vld [vmem:[#allocation8 + $0x78] sm:$0xff]
    %v556 = vld [vmem:[#allocation8 + $0x80] sm:$0xff]
    %v557 = vld [vmem:[#allocation8 + $0x88] sm:$0xff]
    %v558 = vld [vmem:[#allocation8 + $0x90] sm:$0xff]
    %v559 = vld [vmem:[#allocation8 + $0x98] sm:$0xff]
    %v560 = vld [vmem:[#allocation8 + $0xa0] sm:$0xff]
    %v561 = vld [vmem:[#allocation8 + $0xa8] sm:$0xff]
    %v562 = vld [vmem:[#allocation8 + $0xb0] sm:$0xff]
    %v563 = vld [vmem:[#allocation8 + $0xb8] sm:$0xff]
    %v564 = vld [vmem:[#allocation8 + $0xc0] sm:$0xff]
    %v565 = vld [vmem:[#allocation8 + $0xc8] sm:$0xff]
    %v566 = vld [vmem:[#allocation8 + $0xd0] sm:$0xff]
    %v567 = vld [vmem:[#allocation8 + $0xd8] sm:$0xff]
    %v568 = vld [vmem:[#allocation8 + $0xe0] sm:$0xff]
    %v569 = vld [vmem:[#allocation8 + $0xe8] sm:$0xff]
    %v570 = vld [vmem:[#allocation8 + $0xf0] sm:$0xff]
    %v571 = vld [vmem:[#allocation8 + $0xf8] sm:$0xff]
    %v572 = vld [vmem:[#allocation8 + $0x100] sm:$0xff]
    %v573 = vld [vmem:[#allocation8 + $0x108] sm:$0xff]
    %v574 = vld [vmem:[#allocation8 + $0x110] sm:$0xff]
    %v575 = vld [vmem:[#allocation8 + $0x118] sm:$0xff]
    %v576 = vld [vmem:[#allocation8 + $0x120] sm:$0xff]
    %v577 = vld [vmem:[#allocation8 + $0x128] sm:$0xff]
    %v578 = vld [vmem:[#allocation8 + $0x130] sm:$0xff]
    %v579 = vld [vmem:[#allocation8 + $0x138] sm:$0xff]
    %v580 = vld [vmem:[#allocation8 + $0x140] sm:$0xff]
    %v581 = vld [vmem:[#allocation8 + $0x148] sm:$0xff]
    %v582 = vld [vmem:[#allocation8 + $0x150] sm:$0xff]
    %v583 = vld [vmem:[#allocation8 + $0x158] sm:$0xff]
    %v584 = vld [vmem:[#allocation8 + $0x160] sm:$0xff]
    %v585 = vld [vmem:[#allocation8 + $0x168] sm:$0xff]
    %v586 = vld [vmem:[#allocation8 + $0x170] sm:$0xff]
    %v587 = vld [vmem:[#allocation8 + $0x178] sm:$0xff]
    %v588 = vld [vmem:[#allocation8 + $0x180] sm:$0xff]
    %v589 = vld [vmem:[#allocation8 + $0x188] sm:$0xff]
    %v590 = vld [vmem:[#allocation8 + $0x190] sm:$0xff]
    %v591 = vld [vmem:[#allocation8 + $0x198] sm:$0xff]
    %v592 = vld [vmem:[#allocation8 + $0x1a0] sm:$0xff]
    %v593 = vld [vmem:[#allocation8 + $0x1a8] sm:$0xff]
    %v594 = vld [vmem:[#allocation8 + $0x1b0] sm:$0xff]
    %v595 = vld [vmem:[#allocation8 + $0x1b8] sm:$0xff]
    %v596 = vld [vmem:[#allocation8 + $0x1c0] sm:$0xff]
    %v597 = vld [vmem:[#allocation8 + $0x1c8] sm:$0xff]
    %v598 = vld [vmem:[#allocation8 + $0x1d0] sm:$0xff]
    %v599 = vld [vmem:[#allocation8 + $0x1d8] sm:$0xff]
    %v600 = vld [vmem:[#allocation8 + $0x1e0] sm:$0xff]
    %v601 = vld [vmem:[#allocation8 + $0x1e8] sm:$0xff]
    %v602 = vld [vmem:[#allocation8 + $0x1f0] sm:$0xff]
    %v603 = vld [vmem:[#allocation8 + $0x1f8] sm:$0xff]
    %v604 = vld [vmem:[%s7] sm:$0x3]
    %v669 = vunpack.c.l.b16 %v540
    %v670 = vunpack.c.h.b16 %v540
    %v671 = vunpack.c.l.b16 %v541
    %v672 = vunpack.c.h.b16 %v541
    %v673 = vunpack.c.l.b16 %v542
    %v674 = vunpack.c.h.b16 %v542
    %v675 = vunpack.c.l.b16 %v543
    %v676 = vunpack.c.h.b16 %v543
    %v677 = vunpack.c.l.b16 %v544
    %v678 = vunpack.c.h.b16 %v544
    %v679 = vunpack.c.l.b16 %v545
    %v680 = vunpack.c.h.b16 %v545
    %v681 = vunpack.c.l.b16 %v546
    %v682 = vunpack.c.h.b16 %v546
    %v683 = vunpack.c.l.b16 %v547
    %v684 = vunpack.c.h.b16 %v547
    %v685 = vunpack.c.l.b16 %v548
    %v686 = vunpack.c.h.b16 %v548
    %v687 = vunpack.c.l.b16 %v549
    %v688 = vunpack.c.h.b16 %v549
    %v689 = vunpack.c.l.b16 %v550
    %v690 = vunpack.c.h.b16 %v550
    %v691 = vunpack.c.l.b16 %v551
    %v692 = vunpack.c.h.b16 %v551
    %v693 = vunpack.c.l.b16 %v552
    %v694 = vunpack.c.h.b16 %v552
    %v695 = vunpack.c.l.b16 %v553
    %v696 = vunpack.c.h.b16 %v553
    %v697 = vunpack.c.l.b16 %v554
    %v698 = vunpack.c.h.b16 %v554
    %v699 = vunpack.c.l.b16 %v555
    %v700 = vunpack.c.h.b16 %v555
    %v701 = vunpack.c.l.b16 %v556
    %v702 = vunpack.c.h.b16 %v556
    %v703 = vunpack.c.l.b16 %v557
    %v704 = vunpack.c.h.b16 %v557
    %v705 = vunpack.c.l.b16 %v558
    %v706 = vunpack.c.h.b16 %v558
    %v707 = vunpack.c.l.b16 %v559
    %v708 = vunpack.c.h.b16 %v559
    %v709 = vunpack.c.l.b16 %v560
    %v710 = vunpack.c.h.b16 %v560
    %v711 = vunpack.c.l.b16 %v561
    %v712 = vunpack.c.h.b16 %v561
    %v713 = vunpack.c.l.b16 %v562
    %v714 = vunpack.c.h.b16 %v562
    %v715 = vunpack.c.l.b16 %v563
    %v716 = vunpack.c.h.b16 %v563
    %v717 = vunpack.c.l.b16 %v564
    %v718 = vunpack.c.h.b16 %v564
    %v719 = vunpack.c.l.b16 %v565
    %v720 = vunpack.c.h.b16 %v565
    %v721 = vunpack.c.l.b16 %v566
    %v722 = vunpack.c.h.b16 %v566
    %v723 = vunpack.c.l.b16 %v567
    %v724 = vunpack.c.h.b16 %v567
    %v725 = vunpack.c.l.b16 %v568
    %v726 = vunpack.c.h.b16 %v568
    %v727 = vunpack.c.l.b16 %v569
    %v728 = vunpack.c.h.b16 %v569
    %v729 = vunpack.c.l.b16 %v570
    %v730 = vunpack.c.h.b16 %v570
    %v731 = vunpack.c.l.b16 %v571
    %v732 = vunpack.c.h.b16 %v571
    %v733 = vunpack.c.l.b16 %v572
    %v734 = vunpack.c.h.b16 %v572
    %v735 = vunpack.c.l.b16 %v573
    %v736 = vunpack.c.h.b16 %v573
    %v737 = vunpack.c.l.b16 %v574
    %v738 = vunpack.c.h.b16 %v574
    %v739 = vunpack.c.l.b16 %v575
    %v740 = vunpack.c.h.b16 %v575
    %v741 = vunpack.c.l.b16 %v576
    %v742 = vunpack.c.h.b16 %v576
    %v743 = vunpack.c.l.b16 %v577
    %v744 = vunpack.c.h.b16 %v577
    %v745 = vunpack.c.l.b16 %v578
    %v746 = vunpack.c.h.b16 %v578
    %v747 = vunpack.c.l.b16 %v579
    %v748 = vunpack.c.h.b16 %v579
    %v749 = vunpack.c.l.b16 %v580
    %v750 = vunpack.c.h.b16 %v580
    %v751 = vunpack.c.l.b16 %v581
    %v752 = vunpack.c.h.b16 %v581
    %v753 = vunpack.c.l.b16 %v582
    %v754 = vunpack.c.h.b16 %v582
    %v755 = vunpack.c.l.b16 %v583
    %v756 = vunpack.c.h.b16 %v583
    %v757 = vunpack.c.l.b16 %v584
    %v758 = vunpack.c.h.b16 %v584
    %v759 = vunpack.c.l.b16 %v585
    %v760 = vunpack.c.h.b16 %v585
    %v761 = vunpack.c.l.b16 %v586
    %v762 = vunpack.c.h.b16 %v586
    %v763 = vunpack.c.l.b16 %v587
    %v764 = vunpack.c.h.b16 %v587
    %v765 = vunpack.c.l.b16 %v588
    %v766 = vunpack.c.h.b16 %v588
    %v767 = vunpack.c.l.b16 %v589
    %v768 = vunpack.c.h.b16 %v589
    %v769 = vunpack.c.l.b16 %v590
    %v770 = vunpack.c.h.b16 %v590
    %v771 = vunpack.c.l.b16 %v591
    %v772 = vunpack.c.h.b16 %v591
    %v773 = vunpack.c.l.b16 %v592
    %v774 = vunpack.c.h.b16 %v592
    %v775 = vunpack.c.l.b16 %v593
    %v776 = vunpack.c.h.b16 %v593
    %v777 = vunpack.c.l.b16 %v594
    %v778 = vunpack.c.h.b16 %v594
    %v779 = vunpack.c.l.b16 %v595
    %v780 = vunpack.c.h.b16 %v595
    %v781 = vunpack.c.l.b16 %v596
    %v782 = vunpack.c.h.b16 %v596
    %v783 = vunpack.c.l.b16 %v597
    %v784 = vunpack.c.h.b16 %v597
    %v785 = vunpack.c.l.b16 %v598
    %v786 = vunpack.c.h.b16 %v598
    %v787 = vunpack.c.l.b16 %v599
    %v788 = vunpack.c.h.b16 %v599
    %v789 = vunpack.c.l.b16 %v600
    %v790 = vunpack.c.h.b16 %v600
    %v791 = vunpack.c.l.b16 %v601
    %v792 = vunpack.c.h.b16 %v601
    %v793 = vunpack.c.l.b16 %v602
    %v794 = vunpack.c.h.b16 %v602
    %v795 = vunpack.c.l.b16 %v603
    %v796 = vunpack.c.h.b16 %v603
    %v797 = vpack.c.b16 %v671, %v669
    %v798 = vpack.c.b16 %v672, %v670
    %v799 = vpack.c.b16 %v675, %v673
    %v800 = vpack.c.b16 %v676, %v674
    %v801 = vpack.c.b16 %v679, %v677
    %v802 = vpack.c.b16 %v680, %v678
    %v803 = vpack.c.b16 %v683, %v681
    %v804 = vpack.c.b16 %v684, %v682
    %v805 = vpack.c.b16 %v687, %v685
    %v806 = vpack.c.b16 %v688, %v686
    %v807 = vpack.c.b16 %v691, %v689
    %v808 = vpack.c.b16 %v692, %v690
    %v809 = vpack.c.b16 %v695, %v693
    %v810 = vpack.c.b16 %v696, %v694
    %v811 = vpack.c.b16 %v699, %v697
    %v812 = vpack.c.b16 %v700, %v698
    %v813 = vpack.c.b16 %v703, %v701
    %v814 = vpack.c.b16 %v704, %v702
    %v815 = vpack.c.b16 %v707, %v705
    %v816 = vpack.c.b16 %v708, %v706
    %v817 = vpack.c.b16 %v711, %v709
    %v818 = vpack.c.b16 %v712, %v710
    %v819 = vpack.c.b16 %v715, %v713
    %v820 = vpack.c.b16 %v716, %v714
    %v821 = vpack.c.b16 %v719, %v717
    %v822 = vpack.c.b16 %v720, %v718
    %v823 = vpack.c.b16 %v723, %v721
    %v824 = vpack.c.b16 %v724, %v722
    %v825 = vpack.c.b16 %v727, %v725
    %v826 = vpack.c.b16 %v728, %v726
    %v827 = vpack.c.b16 %v731, %v729
    %v828 = vpack.c.b16 %v732, %v730
    %v829 = vpack.c.b16 %v735, %v733
    %v830 = vpack.c.b16 %v736, %v734
    %v831 = vpack.c.b16 %v739, %v737
    %v832 = vpack.c.b16 %v740, %v738
    %v833 = vpack.c.b16 %v743, %v741
    %v834 = vpack.c.b16 %v744, %v742
    %v835 = vpack.c.b16 %v747, %v745
    %v836 = vpack.c.b16 %v748, %v746
    %v837 = vpack.c.b16 %v751, %v749
    %v838 = vpack.c.b16 %v752, %v750
    %v839 = vpack.c.b16 %v755, %v753
    %v840 = vpack.c.b16 %v756, %v754
    %v841 = vpack.c.b16 %v759, %v757
    %v842 = vpack.c.b16 %v760, %v758
    %v843 = vpack.c.b16 %v763, %v761
    %v844 = vpack.c.b16 %v764, %v762
    %v845 = vpack.c.b16 %v767, %v765
    %v846 = vpack.c.b16 %v768, %v766
    %v847 = vpack.c.b16 %v771, %v769
    %v848 = vpack.c.b16 %v772, %v770
    %v849 = vpack.c.b16 %v775, %v773
    %v850 = vpack.c.b16 %v776, %v774
    %v851 = vpack.c.b16 %v779, %v777
    %v852 = vpack.c.b16 %v780, %v778
    %v853 = vpack.c.b16 %v783, %v781
    %v854 = vpack.c.b16 %v784, %v782
    %v855 = vpack.c.b16 %v787, %v785
    %v856 = vpack.c.b16 %v788, %v786
    %v857 = vpack.c.b16 %v791, %v789
    %v858 = vpack.c.b16 %v792, %v790
    %v859 = vpack.c.b16 %v795, %v793
    %v860 = vpack.c.b16 %v796, %v794
    %925 = vmatprep.subr.bf16.mxu0 %v798
    %926 = vmatpush1.bf16.msra.mxu0 %v797
    %927 = vmatprep.subr.bf16.mxu0 %v800
    %928 = vmatpush1.bf16.msra.mxu0 %v799
    %929 = vmatprep.subr.bf16.mxu0 %v802
    %930 = vmatpush1.bf16.msra.mxu0 %v801
    %931 = vmatprep.subr.bf16.mxu0 %v804
    %932 = vmatpush1.bf16.msra.mxu0 %v803
    %933 = vmatprep.subr.bf16.mxu0 %v806
    %934 = vmatpush1.bf16.msra.mxu0 %v805
    %935 = vmatprep.subr.bf16.mxu0 %v808
    %936 = vmatpush1.bf16.msra.mxu0 %v807
    %937 = vmatprep.subr.bf16.mxu0 %v810
    %938 = vmatpush1.bf16.msra.mxu0 %v809
    %939 = vmatprep.subr.bf16.mxu0 %v812
    %940 = vmatpush1.bf16.msra.mxu0 %v811
    %941 = vmatprep.subr.bf16.mxu0 %v814
    %942 = vmatpush1.bf16.msra.mxu0 %v813
    %943 = vmatprep.subr.bf16.mxu0 %v816
    %944 = vmatpush1.bf16.msra.mxu0 %v815
    %945 = vmatprep.subr.bf16.mxu0 %v818
    %946 = vmatpush1.bf16.msra.mxu0 %v817
    %947 = vmatprep.subr.bf16.mxu0 %v820
    %948 = vmatpush1.bf16.msra.mxu0 %v819
    %949 = vmatprep.subr.bf16.mxu0 %v822
    %950 = vmatpush1.bf16.msra.mxu0 %v821
    %951 = vmatprep.subr.bf16.mxu0 %v824
    %952 = vmatpush1.bf16.msra.mxu0 %v823
    %953 = vmatprep.subr.bf16.mxu0 %v826
    %954 = vmatpush1.bf16.msra.mxu0 %v825
    %955 = vmatprep.subr.bf16.mxu0 %v828
    %956 = vmatpush1.bf16.msra.mxu0 %v827
    %957 = vmatprep.mubr.bf16.mxu0 %v537
    %958 = vmatmul.mubr.bf16.gmra.mrb[0].mxu0 %v536
    %v959 = vpop.f32.mrb[0].mxu0
    %v960 = vadd.f32 0.0, %v959
    %v961 = vpop.f32.mrb[0].mxu0
    %v962 = vadd.f32 0.0, %v961
    %v963 = vpop.f32.mrb[0].mxu0
    %v964 = vadd.f32 0.0, %v963
    %v965 = vpop.f32.mrb[0].mxu0
    %v966 = vadd.f32 0.0, %v965
    %967 = vdwg.mxu0
    %968 = vmatprep.subr.bf16.mxu0 %v830
    %969 = vmatpush1.bf16.msra.mxu0 %v829
    %970 = vmatprep.subr.bf16.mxu0 %v832
    %971 = vmatpush1.bf16.msra.mxu0 %v831
    %972 = vmatprep.subr.bf16.mxu0 %v834
    %973 = vmatpush1.bf16.msra.mxu0 %v833
    %974 = vmatprep.subr.bf16.mxu0 %v836
    %975 = vmatpush1.bf16.msra.mxu0 %v835
    %976 = vmatprep.subr.bf16.mxu0 %v838
    %977 = vmatpush1.bf16.msra.mxu0 %v837
    %978 = vmatprep.subr.bf16.mxu0 %v840
    %979 = vmatpush1.bf16.msra.mxu0 %v839
    %980 = vmatprep.subr.bf16.mxu0 %v842
    %981 = vmatpush1.bf16.msra.mxu0 %v841
    %982 = vmatprep.subr.bf16.mxu0 %v844
    %983 = vmatpush1.bf16.msra.mxu0 %v843
    %984 = vmatprep.subr.bf16.mxu0 %v846
    %985 = vmatpush1.bf16.msra.mxu0 %v845
    %986 = vmatprep.subr.bf16.mxu0 %v848
    %987 = vmatpush1.bf16.msra.mxu0 %v847
    %988 = vmatprep.subr.bf16.mxu0 %v850
    %989 = vmatpush1.bf16.msra.mxu0 %v849
    %990 = vmatprep.subr.bf16.mxu0 %v852
    %991 = vmatpush1.bf16.msra.mxu0 %v851
    %992 = vmatprep.subr.bf16.mxu0 %v854
    %993 = vmatpush1.bf16.msra.mxu0 %v853
    %994 = vmatprep.subr.bf16.mxu0 %v856
    %995 = vmatpush1.bf16.msra.mxu0 %v855
    %996 = vmatprep.subr.bf16.mxu0 %v858
    %997 = vmatpush1.bf16.msra.mxu0 %v857
    %998 = vmatprep.subr.bf16.mxu0 %v860
    %999 = vmatpush1.bf16.msra.mxu0 %v859
    %1000 = vmatprep.mubr.bf16.mxu0 %v539
    %1001 = vmatmul.mubr.bf16.gmra.mrb[0].mxu0 %v538
    %v1002 = vpop.f32.mrb[0].mxu0
    %v1003 = vadd.f32 %v960, %v1002
    %v1004 = vpop.f32.mrb[0].mxu0
    %v1005 = vadd.f32 %v962, %v1004
    %v1006 = vpop.f32.mrb[0].mxu0
    %v1007 = vadd.f32 %v964, %v1006
    %v1008 = vpop.f32.mrb[0].mxu0
    %v1009 = vadd.f32 %v966, %v1008
    %1010 = vdwg.mxu0
    %v1011 = vpack.c.bf16 %v1007, %v1003
    %v1012 = vpack.c.bf16 %v1009, %v1005
    %v1014 = vlaneseq
    %v1015 = vshrl.u32 %v1014, 7
    %v1016 = vsub.s32 0, %v1015
    %v1017 = vrot.slane %v604, %v1016
    %v1018 = vlaneseq
    %v1019 = vshrl.u32 %v1018, 7
    %v1020 = vsub.s32 1, %v1019
    %v1021 = vrot.slane %v604, %v1020
    %1024 = vmatprep.subr.bf16.mxu0 %v1012
    %1025 = vmatpush1.bf16.msra.mxu0 %v1011
    %1026 = vmatprep.subr.bf16.mxu0 0
    %1027 = vmatpush1.bf16.msra.mxu0 0
    %1028 = vmatprep.subr.bf16.mxu0 0
    %1029 = vmatpush1.bf16.msra.mxu0 0
    %1030 = vmatprep.subr.bf16.mxu0 0
    %1031 = vmatpush1.bf16.msra.mxu0 0
    %1032 = vmatprep.subr.bf16.mxu0 0
    %1033 = vmatpush1.bf16.msra.mxu0 0
    %1034 = vmatprep.subr.bf16.mxu0 0
    %1035 = vmatpush1.bf16.msra.mxu0 0
    %1036 = vmatprep.subr.bf16.mxu0 0
    %1037 = vmatpush1.bf16.msra.mxu0 0
    %1038 = vmatprep.subr.bf16.mxu0 0
    %1039 = vmatpush1.bf16.msra.mxu0 0
    %1040 = vmatprep.subr.bf16.mxu0 0
    %1041 = vmatpush1.bf16.msra.mxu0 0
    %1042 = vmatprep.subr.bf16.mxu0 0
    %1043 = vmatpush1.bf16.msra.mxu0 0
    %1044 = vmatprep.subr.bf16.mxu0 0
    %1045 = vmatpush1.bf16.msra.mxu0 0
    %1046 = vmatprep.subr.bf16.mxu0 0
    %1047 = vmatpush1.bf16.msra.mxu0 0
    %1048 = vmatprep.subr.bf16.mxu0 0
    %1049 = vmatpush1.bf16.msra.mxu0 0
    %1050 = vmatprep.subr.bf16.mxu0 0
    %1051 = vmatpush1.bf16.msra.mxu0 0
    %1052 = vmatprep.subr.bf16.mxu0 0
    %1053 = vmatpush1.bf16.msra.mxu0 0
    %1054 = vmatprep.subr.bf16.mxu0 0
    %1055 = vmatpush1.bf16.msra.mxu0 0
    %1056 = vmatprep.mubr.bf16.mxu0 0
    %1057 = vmatmul.mubr.bf16.gmra.mrb[0].mxu0 %v440
    %v1058 = vpop.f32.mrb[0].mxu0
    %v1059 = vadd.f32 %v1017, %v1058
    %v1060 = vpop.f32.mrb[0].mxu0
    %v1061 = vadd.f32 %v1021, %v1060
    %v1062 = vpop.f32.mrb[0].mxu0
    %v1063 = vadd.f32 %v1017, %v1062
    %v1064 = vpop.f32.mrb[0].mxu0
    %v1065 = vadd.f32 %v1021, %v1064
    %1066 = vdwg.mxu0
    %v1067 = vmax.f32 %v1059, 0.0
    %v1068 = vmax.f32 %v1061, 0.0
    %v1069 = vmax.f32 %v1063, 0.0
    %v1070 = vmax.f32 %v1065, 0.0
    %v1071 = vpack.c.bf16 %v1069, %v1067
    %v1072 = vpack.c.bf16 %v1070, %v1068
    %v1073 = vld [vmem:[#allocation10] sm:$0xf]
    %v1074 = vld [vmem:[#allocation10 + $0x4] sm:$0xf]
    %v1075 = vld [vmem:[#allocation10 + $0x8] sm:$0xf]
    %v1076 = vld [vmem:[#allocation10 + $0xc] sm:$0xf]
    %v1077 = vld [vmem:[#allocation10 + $0x10] sm:$0xf]
    %v1078 = vld [vmem:[#allocation10 + $0x14] sm:$0xf]
    %v1079 = vld [vmem:[#allocation10 + $0x18] sm:$0xf]
    %v1080 = vld [vmem:[#allocation10 + $0x1c] sm:$0xf]
    %v1081 = vld [vmem:[#allocation10 + $0x20] sm:$0xf]
    %v1082 = vld [vmem:[#allocation10 + $0x24] sm:$0xf]
    %v1083 = vld [vmem:[#allocation10 + $0x28] sm:$0xf]
    %v1084 = vld [vmem:[#allocation10 + $0x2c] sm:$0xf]
    %v1085 = vld [vmem:[#allocation10 + $0x30] sm:$0xf]
    %v1086 = vld [vmem:[#allocation10 + $0x34] sm:$0xf]
    %v1087 = vld [vmem:[#allocation10 + $0x38] sm:$0xf]
    %v1088 = vld [vmem:[#allocation10 + $0x3c] sm:$0xf]
    %v1089 = vld [vmem:[#allocation10 + $0x40] sm:$0xf]
    %v1090 = vld [vmem:[#allocation10 + $0x44] sm:$0xf]
    %v1091 = vld [vmem:[#allocation10 + $0x48] sm:$0xf]
    %v1092 = vld [vmem:[#allocation10 + $0x4c] sm:$0xf]
    %v1093 = vld [vmem:[#allocation10 + $0x50] sm:$0xf]
    %v1094 = vld [vmem:[#allocation10 + $0x54] sm:$0xf]
    %v1095 = vld [vmem:[#allocation10 + $0x58] sm:$0xf]
    %v1096 = vld [vmem:[#allocation10 + $0x5c] sm:$0xf]
    %v1097 = vld [vmem:[#allocation10 + $0x60] sm:$0xf]
    %v1098 = vld [vmem:[#allocation10 + $0x64] sm:$0xf]
    %v1099 = vld [vmem:[#allocation10 + $0x68] sm:$0xf]
    %v1100 = vld [vmem:[#allocation10 + $0x6c] sm:$0xf]
    %v1101 = vld [vmem:[#allocation10 + $0x70] sm:$0xf]
    %v1102 = vld [vmem:[#allocation10 + $0x74] sm:$0xf]
    %v1103 = vld [vmem:[#allocation10 + $0x78] sm:$0xf]
    %v1104 = vld [vmem:[#allocation10 + $0x7c] sm:$0xf]
    %v1105 = vld [vmem:[%s8] sm:$0x1]
    %v1138 = vunpack.c.l.b16 %v1073
    %v1139 = vunpack.c.l.b16 %v1074
    %v1140 = vunpack.c.l.b16 %v1075
    %v1141 = vunpack.c.l.b16 %v1076
    %v1142 = vunpack.c.l.b16 %v1077
    %v1143 = vunpack.c.l.b16 %v1078
    %v1144 = vunpack.c.l.b16 %v1079
    %v1145 = vunpack.c.l.b16 %v1080
    %v1146 = vunpack.c.l.b16 %v1081
    %v1147 = vunpack.c.l.b16 %v1082
    %v1148 = vunpack.c.l.b16 %v1083
    %v1149 = vunpack.c.l.b16 %v1084
    %v1150 = vunpack.c.l.b16 %v1085
    %v1151 = vunpack.c.l.b16 %v1086
    %v1152 = vunpack.c.l.b16 %v1087
    %v1153 = vunpack.c.l.b16 %v1088
    %v1154 = vunpack.c.l.b16 %v1089
    %v1155 = vunpack.c.l.b16 %v1090
    %v1156 = vunpack.c.l.b16 %v1091
    %v1157 = vunpack.c.l.b16 %v1092
    %v1158 = vunpack.c.l.b16 %v1093
    %v1159 = vunpack.c.l.b16 %v1094
    %v1160 = vunpack.c.l.b16 %v1095
    %v1161 = vunpack.c.l.b16 %v1096
    %v1162 = vunpack.c.l.b16 %v1097
    %v1163 = vunpack.c.l.b16 %v1098
    %v1164 = vunpack.c.l.b16 %v1099
    %v1165 = vunpack.c.l.b16 %v1100
    %v1166 = vunpack.c.l.b16 %v1101
    %v1167 = vunpack.c.l.b16 %v1102
    %v1168 = vunpack.c.l.b16 %v1103
    %v1169 = vunpack.c.l.b16 %v1104
    %v1170 = vpack.c.b16 %v1139, %v1138
    %v1171 = vpack.c.b16 %v1141, %v1140
    %v1172 = vpack.c.b16 %v1143, %v1142
    %v1173 = vpack.c.b16 %v1145, %v1144
    %v1174 = vpack.c.b16 %v1147, %v1146
    %v1175 = vpack.c.b16 %v1149, %v1148
    %v1176 = vpack.c.b16 %v1151, %v1150
    %v1177 = vpack.c.b16 %v1153, %v1152
    %v1178 = vpack.c.b16 %v1155, %v1154
    %v1179 = vpack.c.b16 %v1157, %v1156
    %v1180 = vpack.c.b16 %v1159, %v1158
    %v1181 = vpack.c.b16 %v1161, %v1160
    %v1182 = vpack.c.b16 %v1163, %v1162
    %v1183 = vpack.c.b16 %v1165, %v1164
    %v1184 = vpack.c.b16 %v1167, %v1166
    %v1185 = vpack.c.b16 %v1169, %v1168
    %1202 = vmatprep.subr.bf16.mxu0 0
    %1203 = vmatpush1.bf16.msra.mxu0 %v1170
    %1204 = vmatprep.subr.bf16.mxu0 0
    %1205 = vmatpush1.bf16.msra.mxu0 %v1171
    %1206 = vmatprep.subr.bf16.mxu0 0
    %1207 = vmatpush1.bf16.msra.mxu0 %v1172
    %1208 = vmatprep.subr.bf16.mxu0 0
    %1209 = vmatpush1.bf16.msra.mxu0 %v1173
    %1210 = vmatprep.subr.bf16.mxu0 0
    %1211 = vmatpush1.bf16.msra.mxu0 %v1174
    %1212 = vmatprep.subr.bf16.mxu0 0
    %1213 = vmatpush1.bf16.msra.mxu0 %v1175
    %1214 = vmatprep.subr.bf16.mxu0 0
    %1215 = vmatpush1.bf16.msra.mxu0 %v1176
    %1216 = vmatprep.subr.bf16.mxu0 0
    %1217 = vmatpush1.bf16.msra.mxu0 %v1177
    %1218 = vmatprep.subr.bf16.mxu0 0
    %1219 = vmatpush1.bf16.msra.mxu0 %v1178
    %1220 = vmatprep.subr.bf16.mxu0 0
    %1221 = vmatpush1.bf16.msra.mxu0 %v1179
    %1222 = vmatprep.subr.bf16.mxu0 0
    %1223 = vmatpush1.bf16.msra.mxu0 %v1180
    %1224 = vmatprep.subr.bf16.mxu0 0
    %1225 = vmatpush1.bf16.msra.mxu0 %v1181
    %1226 = vmatprep.subr.bf16.mxu0 0
    %1227 = vmatpush1.bf16.msra.mxu0 %v1182
    %1228 = vmatprep.subr.bf16.mxu0 0
    %1229 = vmatpush1.bf16.msra.mxu0 %v1183
    %1230 = vmatprep.subr.bf16.mxu0 0
    %1231 = vmatpush1.bf16.msra.mxu0 %v1184
    %1232 = vmatprep.subr.bf16.mxu0 0
    %1233 = vmatpush1.bf16.msra.mxu0 %v1185
    %1234 = vmatprep.mubr.bf16.mxu0 %v1072
    %1235 = vmatmul.mubr.bf16.gmra.mrb[0].mxu0 %v1071
    %v1236 = vpop.f32.mrb[0].mxu0
    %v1237 = vadd.f32 0.0, %v1236
    %v1238 = vpop.f32.mrb[0].mxu0
    %v1239 = vpop.f32.mrb[0].mxu0
    %v1240 = vadd.f32 0.0, %v1239
    %v1241 = vpop.f32.mrb[0].mxu0
    %1242 = vdwg.mxu0
    %v1243 = vpack.c.bf16 %v1240, %v1237
    %v1245 = vlaneseq
    %v1246 = vshrl.u32 %v1245, 7
    %v1247 = vsub.s32 0, %v1246
    %v1248 = vrot.slane %v1105, %v1247
    %1250 = vmatprep.subr.bf16.mxu0 0
    %1251 = vmatpush1.bf16.msra.mxu0 %v1243
    %1252 = vmatprep.subr.bf16.mxu0 0
    %1253 = vmatpush1.bf16.msra.mxu0 0
    %1254 = vmatprep.subr.bf16.mxu0 0
    %1255 = vmatpush1.bf16.msra.mxu0 0
    %1256 = vmatprep.subr.bf16.mxu0 0
    %1257 = vmatpush1.bf16.msra.mxu0 0
    %1258 = vmatprep.subr.bf16.mxu0 0
    %1259 = vmatpush1.bf16.msra.mxu0 0
    %1260 = vmatprep.subr.bf16.mxu0 0
    %1261 = vmatpush1.bf16.msra.mxu0 0
    %1262 = vmatprep.subr.bf16.mxu0 0
    %1263 = vmatpush1.bf16.msra.mxu0 0
    %1264 = vmatprep.subr.bf16.mxu0 0
    %1265 = vmatpush1.bf16.msra.mxu0 0
    %1266 = vmatprep.subr.bf16.mxu0 0
    %1267 = vmatpush1.bf16.msra.mxu0 0
    %1268 = vmatprep.subr.bf16.mxu0 0
    %1269 = vmatpush1.bf16.msra.mxu0 0
    %1270 = vmatprep.subr.bf16.mxu0 0
    %1271 = vmatpush1.bf16.msra.mxu0 0
    %1272 = vmatprep.subr.bf16.mxu0 0
    %1273 = vmatpush1.bf16.msra.mxu0 0
    %1274 = vmatprep.subr.bf16.mxu0 0
    %1275 = vmatpush1.bf16.msra.mxu0 0
    %1276 = vmatprep.subr.bf16.mxu0 0
    %1277 = vmatpush1.bf16.msra.mxu0 0
    %1278 = vmatprep.subr.bf16.mxu0 0
    %1279 = vmatpush1.bf16.msra.mxu0 0
    %1280 = vmatprep.subr.bf16.mxu0 0
    %1281 = vmatpush1.bf16.msra.mxu0 0
    %1282 = vmatprep.mubr.bf16.mxu0 0
    %1283 = vmatmul.mubr.bf16.gmra.mrb[0].mxu0 %v440
    %v1284 = vpop.f32.mrb[0].mxu0
    %v1285 = vadd.f32 %v1248, %v1284
    %v1286 = vpop.f32.mrb[0].mxu0
    %v1287 = vpop.f32.mrb[0].mxu0
    %v1288 = vadd.f32 %v1248, %v1287
    %v1289 = vpop.f32.mrb[0].mxu0
    %1290 = vdwg.mxu0
    %v1291 = vmax.f32 %v1285, 0.0
    %v1292 = vmax.f32 %v1288, 0.0
    %v1293 = vpack.c.bf16 %v1292, %v1291
    %v1294 = vld [vmem:[#allocation11] sm:$0xff]
    %v1295 = vld [vmem:[#allocation11 + $0x8] sm:$0xff]
    %v1296 = vld [vmem:[#allocation11 + $0x10] sm:$0xff]
    %v1297 = vld [vmem:[#allocation11 + $0x18] sm:$0xff]
    %v1298 = vld [vmem:[#allocation11 + $0x20] sm:$0xff]
    %v1299 = vld [vmem:[#allocation11 + $0x28] sm:$0xff]
    %v1300 = vld [vmem:[#allocation11 + $0x30] sm:$0xff]
    %v1301 = vld [vmem:[#allocation11 + $0x38] sm:$0xff]
    %v1302 = vld [vmem:[#allocation11 + $0x40] sm:$0xff]
    %v1303 = vld [vmem:[#allocation11 + $0x48] sm:$0xff]
    %v1304 = vld [vmem:[#allocation11 + $0x50] sm:$0xff]
    %v1305 = vld [vmem:[#allocation11 + $0x58] sm:$0xff]
    %v1306 = vld [vmem:[#allocation11 + $0x60] sm:$0xff]
    %v1307 = vld [vmem:[#allocation11 + $0x68] sm:$0xff]
    %v1308 = vld [vmem:[#allocation11 + $0x70] sm:$0xff]
    %v1309 = vld [vmem:[#allocation11 + $0x78] sm:$0xff]
    %v1310 = vld [vmem:[%s9] sm:$0x3]
    %v1327 = vunpack.c.l.b16 %v1294
    %v1328 = vunpack.c.h.b16 %v1294
    %v1329 = vunpack.c.l.b16 %v1295
    %v1330 = vunpack.c.h.b16 %v1295
    %v1331 = vunpack.c.l.b16 %v1296
    %v1332 = vunpack.c.h.b16 %v1296
    %v1333 = vunpack.c.l.b16 %v1297
    %v1334 = vunpack.c.h.b16 %v1297
    %v1335 = vunpack.c.l.b16 %v1298
    %v1336 = vunpack.c.h.b16 %v1298
    %v1337 = vunpack.c.l.b16 %v1299
    %v1338 = vunpack.c.h.b16 %v1299
    %v1339 = vunpack.c.l.b16 %v1300
    %v1340 = vunpack.c.h.b16 %v1300
    %v1341 = vunpack.c.l.b16 %v1301
    %v1342 = vunpack.c.h.b16 %v1301
    %v1343 = vunpack.c.l.b16 %v1302
    %v1344 = vunpack.c.h.b16 %v1302
    %v1345 = vunpack.c.l.b16 %v1303
    %v1346 = vunpack.c.h.b16 %v1303
    %v1347 = vunpack.c.l.b16 %v1304
    %v1348 = vunpack.c.h.b16 %v1304
    %v1349 = vunpack.c.l.b16 %v1305
    %v1350 = vunpack.c.h.b16 %v1305
    %v1351 = vunpack.c.l.b16 %v1306
    %v1352 = vunpack.c.h.b16 %v1306
    %v1353 = vunpack.c.l.b16 %v1307
    %v1354 = vunpack.c.h.b16 %v1307
    %v1355 = vunpack.c.l.b16 %v1308
    %v1356 = vunpack.c.h.b16 %v1308
    %v1357 = vunpack.c.l.b16 %v1309
    %v1358 = vunpack.c.h.b16 %v1309
    %v1359 = vpack.c.b16 %v1329, %v1327
    %v1360 = vpack.c.b16 %v1330, %v1328
    %v1361 = vpack.c.b16 %v1333, %v1331
    %v1362 = vpack.c.b16 %v1334, %v1332
    %v1363 = vpack.c.b16 %v1337, %v1335
    %v1364 = vpack.c.b16 %v1338, %v1336
    %v1365 = vpack.c.b16 %v1341, %v1339
    %v1366 = vpack.c.b16 %v1342, %v1340
    %v1367 = vpack.c.b16 %v1345, %v1343
    %v1368 = vpack.c.b16 %v1346, %v1344
    %v1369 = vpack.c.b16 %v1349, %v1347
    %v1370 = vpack.c.b16 %v1350, %v1348
    %v1371 = vpack.c.b16 %v1353, %v1351
    %v1372 = vpack.c.b16 %v1354, %v1352
    %v1373 = vpack.c.b16 %v1357, %v1355
    %v1374 = vpack.c.b16 %v1358, %v1356
    %1391 = vmatprep.subr.bf16.mxu0 %v1360
    %1392 = vmatpush1.bf16.msra.mxu0 %v1359
    %1393 = vmatprep.subr.bf16.mxu0 %v1362
    %1394 = vmatpush1.bf16.msra.mxu0 %v1361
    %1395 = vmatprep.subr.bf16.mxu0 %v1364
    %1396 = vmatpush1.bf16.msra.mxu0 %v1363
    %1397 = vmatprep.subr.bf16.mxu0 %v1366
    %1398 = vmatpush1.bf16.msra.mxu0 %v1365
    %1399 = vmatprep.subr.bf16.mxu0 %v1368
    %1400 = vmatpush1.bf16.msra.mxu0 %v1367
    %1401 = vmatprep.subr.bf16.mxu0 %v1370
    %1402 = vmatpush1.bf16.msra.mxu0 %v1369
    %1403 = vmatprep.subr.bf16.mxu0 %v1372
    %1404 = vmatpush1.bf16.msra.mxu0 %v1371
    %1405 = vmatprep.subr.bf16.mxu0 %v1374
    %1406 = vmatpush1.bf16.msra.mxu0 %v1373
    %1407 = vmatprep.subr.bf16.mxu0 0
    %1408 = vmatpush1.bf16.msra.mxu0 0
    %1409 = vmatprep.subr.bf16.mxu0 0
    %1410 = vmatpush1.bf16.msra.mxu0 0
    %1411 = vmatprep.subr.bf16.mxu0 0
    %1412 = vmatpush1.bf16.msra.mxu0 0
    %1413 = vmatprep.subr.bf16.mxu0 0
    %1414 = vmatpush1.bf16.msra.mxu0 0
    %1415 = vmatprep.subr.bf16.mxu0 0
    %1416 = vmatpush1.bf16.msra.mxu0 0
    %1417 = vmatprep.subr.bf16.mxu0 0
    %1418 = vmatpush1.bf16.msra.mxu0 0
    %1419 = vmatprep.subr.bf16.mxu0 0
    %1420 = vmatpush1.bf16.msra.mxu0 0
    %1421 = vmatprep.subr.bf16.mxu0 0
    %1422 = vmatpush1.bf16.msra.mxu0 0
    %1423 = vmatprep.mubr.bf16.mxu0 0
    %1424 = vmatmul.mubr.bf16.gmra.mrb[0].mxu0 %v1293
    %v1425 = vpop.f32.mrb[0].mxu0
    %v1426 = vadd.f32 0.0, %v1425
    %v1427 = vpop.f32.mrb[0].mxu0
    %v1428 = vadd.f32 0.0, %v1427
    %v1429 = vpop.f32.mrb[0].mxu0
    %v1430 = vadd.f32 0.0, %v1429
    %v1431 = vpop.f32.mrb[0].mxu0
    %v1432 = vadd.f32 0.0, %v1431
    %1433 = vdwg.mxu0
    %v1434 = vpack.c.bf16 %v1430, %v1426
    %v1435 = vpack.c.bf16 %v1432, %v1428
    %v1437 = vlaneseq
    %v1438 = vshrl.u32 %v1437, 7
    %v1439 = vsub.s32 0, %v1438
    %v1440 = vrot.slane %v1310, %v1439
    %v1441 = vlaneseq
    %v1442 = vshrl.u32 %v1441, 7
    %v1443 = vsub.s32 1, %v1442
    %v1444 = vrot.slane %v1310, %v1443
    %1447 = vmatprep.subr.bf16.mxu0 %v1435
    %1448 = vmatpush1.bf16.msra.mxu0 %v1434
    %1449 = vmatprep.subr.bf16.mxu0 0
    %1450 = vmatpush1.bf16.msra.mxu0 0
    %1451 = vmatprep.subr.bf16.mxu0 0
    %1452 = vmatpush1.bf16.msra.mxu0 0
    %1453 = vmatprep.subr.bf16.mxu0 0
    %1454 = vmatpush1.bf16.msra.mxu0 0
    %1455 = vmatprep.subr.bf16.mxu0 0
    %1456 = vmatpush1.bf16.msra.mxu0 0
    %1457 = vmatprep.subr.bf16.mxu0 0
    %1458 = vmatpush1.bf16.msra.mxu0 0
    %1459 = vmatprep.subr.bf16.mxu0 0
    %1460 = vmatpush1.bf16.msra.mxu0 0
    %1461 = vmatprep.subr.bf16.mxu0 0
    %1462 = vmatpush1.bf16.msra.mxu0 0
    %1463 = vmatprep.subr.bf16.mxu0 0
    %1464 = vmatpush1.bf16.msra.mxu0 0
    %1465 = vmatprep.subr.bf16.mxu0 0
    %1466 = vmatpush1.bf16.msra.mxu0 0
    %1467 = vmatprep.subr.bf16.mxu0 0
    %1468 = vmatpush1.bf16.msra.mxu0 0
    %1469 = vmatprep.subr.bf16.mxu0 0
    %1470 = vmatpush1.bf16.msra.mxu0 0
    %1471 = vmatprep.subr.bf16.mxu0 0
    %1472 = vmatpush1.bf16.msra.mxu0 0
    %1473 = vmatprep.subr.bf16.mxu0 0
    %1474 = vmatpush1.bf16.msra.mxu0 0
    %1475 = vmatprep.subr.bf16.mxu0 0
    %1476 = vmatpush1.bf16.msra.mxu0 0
    %1477 = vmatprep.subr.bf16.mxu0 0
    %1478 = vmatpush1.bf16.msra.mxu0 0
    %1479 = vmatprep.mubr.bf16.mxu0 0
    %1480 = vmatmul.mubr.bf16.gmra.mrb[0].mxu0 %v440
    %v1481 = vpop.f32.mrb[0].mxu0
    %v1482 = vadd.f32 %v1440, %v1481
    %v1483 = vpop.f32.mrb[0].mxu0
    %v1484 = vadd.f32 %v1444, %v1483
    %v1485 = vpop.f32.mrb[0].mxu0
    %v1486 = vadd.f32 %v1440, %v1485
    %v1487 = vpop.f32.mrb[0].mxu0
    %v1488 = vadd.f32 %v1444, %v1487
    %1489 = vdwg.mxu0
    %v1490 = vmax.f32 %v1482, 0.0
    %v1491 = vmax.f32 %v1484, 0.0
    %v1492 = vmax.f32 %v1486, 0.0
    %v1493 = vmax.f32 %v1488, 0.0
    %v1494 = vadd.f32 %v1490, %v1492
    %v1495 = vrot.slane %v1494, 4
    %v1496 = vadd.f32 %v1494, %v1495
    %v1497 = vrot.slane %v1496, 2
    %v1498 = vadd.f32 %v1496, %v1497
    %v1499 = vrot.slane %v1498, 1
    %v1500 = vadd.f32 %v1498, %v1499
    %v1501 = vadd.f32 %v1491, %v1493
    %v1502 = vrot.slane %v1501, 4
    %v1503 = vadd.f32 %v1501, %v1502
    %v1504 = vrot.slane %v1503, 2
    %v1505 = vadd.f32 %v1503, %v1504
    %v1506 = vrot.slane %v1505, 1
    %v1507 = vadd.f32 %v1505, %v1506
    %v1508 = vmul.f32 %v1500, 0.0625
    %v1509 = vmul.f32 %v1507, 0.0625
    %v1512 = vcombine.low %v1508, %v1509
    %v1514 = vunpack.c.l.s4 1966171168
    %v1515 = vunpack.c.0.s8 %v1514
    %v1516 = vlaneseq
    %v1517 = vshrl.u32 %v1516, 7
    %v1518 = vsub.s32 %v1515, %v1517
    %v1519 = vrot.slane %v1512, %v1518
    %v1521 = vunpack.c.l.s4 1966171168
    %v1522 = vunpack.c.0.s8 %v1521
    %v1523 = vlaneseq
    %v1524 = vshrl.u32 %v1523, 7
    %v1525 = vsub.s32 %v1522, %v1524
    %v1526 = vrot.slane %v1519, %v1525
    %v1528 = vlaneseq
    %vm1529 = vcmp.ge.s32.totalorder %v1528, 0
    %vm1530 = vcmp.lt.s32.totalorder %v1528, 256
    %vm1531 = vmand %vm1529, %vm1530
    %1532 = vst.msk [vmem:[#allocation13] sm:$0x3] %vm1531, %v1526
    // Predicated region
    $region66: #{tpu_custom_call.1} parent=1 // pred_check
      _
    $region67: #{tpu_custom_call.1} parent=1 // pred_check_branch
      %1534 = sbr.rel (0) target = $region69
    $region68: #{tpu_custom_call.1} parent=1 // pred_region
      %s1536 = ssub.s32 32, 32
      %1537 = vsyncadd [#allocation4], %s1536
      %s1539 = sshll.u32 [#allocation13], 4
      %s1540 = int_to_ptr.vmem [resolvable:$true] %s1539
      %1542 = dma.vmem_to_hbm [thread:$0]  %s1540, 32, %s10, [#allocation4]
    $region69: #{tpu_custom_call.1} parent=1 // pred_fallthru
      _
    // Predicated region
    $region70: #{tpu_custom_call.1} parent=1 // pred_check
      _
    $region71: #{tpu_custom_call.1} parent=1 // pred_check_branch
      %1544 = sbr.rel (0) target = $region73
    $region72: #{tpu_custom_call.1} parent=1 // pred_region
      %1545 = dma.done [#allocation4], 32
    $region73: #{tpu_custom_call.1} parent=1 // pred_fallthru
      _
    %1546 = vsyncpa [#allocation3], 1
    %1547 = vsyncpa [#allocation6], 1
    %1548 = vsyncpa [#allocation9], 1
    %1549 = vsyncpa [#allocation12], 1
    %1550 = vsyncpa [#allocation4], 1

</llo_original>
